<compile_context>
chip_gen: v5e
topology: v5e:2x2
jax: 0.10.0
libtpu: 0.0.40
codegen_flags: <defaults>
</compile_context>

<pallas_src>
import jax
import jax.numpy as jnp
from jax.experimental import pallas as pl
from jax.experimental.pallas import tpu as pltpu

LANES = 128
SUBLANES = 8
MIN_ELEMS = SUBLANES * LANES          # smallest slab we hand to the kernel
NEG_CLAMP = -100.0                    # nn.BCELoss clamps log terms at -100


def _device_config():
    """(preferred #slices on the leading axis, row-tile cap) for this chip."""
    try:
        kind = jax.devices()[0].device_kind.lower()
    except Exception:  # defensive: unknown backend -> safe defaults
        kind = ""
    # Chips with two TensorCores per chip: split the leading "parallel" axis so
    # each core streams half of the rows.  Single-TC chips get 1 slice.
    multi_tc = any(t in kind for t in ("v7", "7x", "v4", "v5p"))
    # v5e: slower HBM (per-step overhead already small at 2 MiB blocks) and a
    # tighter scoped-VMEM budget -> cap at 4096 rows (2 MiB f32 per input block).
    is_v5e = ("v5e" in kind) or ("v5 lite" in kind) or ("v5litepod" in kind)
    row_cap = 4096 if is_v5e else 8192
    return (2 if multi_tc else 1), row_cap


def _make_bce_kernel(row_tile, acc_rows, tiles_per_slice, rows, needs_mask,
                     hard_labels):
    """Build the BCE partial-sum kernel for a fixed static configuration."""
    fold = row_tile // acc_rows

    def _loss(x, y):
        if hard_labels:
            # 0/1 labels: a single transcendental per element (halves EUP work).
            p = jnp.where(y > 0.5, x, 1.0 - x)
            return -jnp.maximum(jnp.log(p), jnp.float32(NEG_CLAMP))
        log_x = jnp.maximum(jnp.log(x), jnp.float32(NEG_CLAMP))
        log_1mx = jnp.maximum(jnp.log(1.0 - x), jnp.float32(NEG_CLAMP))
        # -(y*log_x + (1-y)*log_1mx), refactored to drop one mul+sub / element.
        return -(log_1mx + y * (log_x - log_1mx))

    def kernel(x_ref, y_ref, o_ref, acc_ref):
        c = pl.program_id(0)          # "parallel" slice axis (TensorCores)
        i = pl.program_id(1)          # "arbitrary" reduction axis

        @pl.when(i == 0)
        def _():
            acc_ref[...] = jnp.zeros_like(acc_ref)

        x = x_ref[...].astype(jnp.float32)
        y = y_ref[...].astype(jnp.float32)
        loss = _loss(x, y)

        def _accumulate(val):
            # Fold the block onto (acc_rows, 128): 8 independent VALU add
            # chains (acc_rows=64) instead of one serial chain into one vreg.
            acc_ref[...] += val.reshape(fold, acc_rows, LANES).sum(axis=0)

        if needs_mask:
            row0 = (c * tiles_per_slice + i) * row_tile   # un-clamped global row

            @pl.when(row0 + row_tile <= rows)             # steady state: no mask
            def _():
                _accumulate(loss)

            @pl.when(row0 + row_tile > rows)              # tail / over-coverage
            def _():
                rid = jax.lax.broadcasted_iota(jnp.int32, (row_tile, LANES), 0)
                valid = (row0 + rid) < rows
                # where() does not propagate NaN/Inf from garbage edge rows.
                _accumulate(jnp.where(valid, loss, jnp.float32(0.0)))
        else:
            _accumulate(loss)

        @pl.when(i == tiles_per_slice - 1)
        def _():
            o_ref[...] = acc_ref[...]

    return kernel


def binary_cross_entropy(logits, labels, hard_labels=False, *,
                         _row_cap=None, _force_slices=None):
    """Mean BCE over all elements, matching torch.nn.BCELoss()(logits, labels).

    Inputs may be float32 or bfloat16 (bf16 halves HBM traffic; the kernel
    up-casts to f32 in VMEM).  `hard_labels=True` is an opt-in fast path that
    is only valid when every label is exactly 0 or 1.
    """
    assert logits.shape == labels.shape, (logits.shape, labels.shape)
    n_valid = logits.size
    assert n_valid > 0

    x = logits.reshape(-1)            # free (bitcast) for contiguous inputs
    y = labels.reshape(-1)

    # Zero-copy path whenever the flat size is a multiple of 128 lanes.  Only
    # awkward sizes take a small pad (ones -> exactly-zero loss contribution).
    # TODO(synk): replace this rare pad copy with manual-DMA lane masking.
    if x.size < MIN_ELEMS:
        pad = MIN_ELEMS - x.size
    else:
        pad = (-x.size) % LANES
    if pad:
        x = jnp.concatenate([x, jnp.ones((pad,), x.dtype)])
        y = jnp.concatenate([y, jnp.ones((pad,), y.dtype)])

    rows = x.size // LANES
    x2 = x.reshape(rows, LANES)       # free: size is a multiple of 128
    y2 = y.reshape(rows, LANES)

    slices_pref, row_cap = _device_config()
    if _row_cap is not None:
        row_cap = _row_cap
    if _force_slices is not None:
        slices_pref = _force_slices

    row_tile_raw = min(row_cap, rows)
    acc_rows = 64 if row_tile_raw >= 64 else SUBLANES
    row_tile = (row_tile_raw // acc_rows) * acc_rows
    total_tiles = pl.cdiv(rows, row_tile)
    num_slices = min(slices_pref, total_tiles)
    tiles_per_slice = pl.cdiv(total_tiles, num_slices)
    needs_mask = (num_slices * tiles_per_slice * row_tile) != rows

    kernel = _make_bce_kernel(row_tile, acc_rows, tiles_per_slice, rows,
                              needs_mask, hard_labels)

    def in_map(c, i):
        # Clamp so over-coverage steps re-read the last valid block; their
        # contribution is masked to zero inside the kernel.
        return (jnp.minimum(c * tiles_per_slice + i, total_tiles - 1), 0)

    # VMEM budget: double-buffered inputs + headroom for the f32 element-wise
    # temporaries of one block; kept under every chip's physical VMEM.
    blk_f32 = row_tile * LANES * 4
    in_bytes = 2 * row_tile * LANES * (x2.dtype.itemsize + y2.dtype.itemsize)
    vmem_limit = int(min(56 << 20,
                         max(16 << 20, in_bytes + 8 * blk_f32 + (4 << 20))))

    n_elems = rows * LANES
    cost = pl.CostEstimate(
        flops=6 * n_elems,
        transcendentals=(1 if hard_labels else 2) * n_elems,
        bytes_accessed=n_elems * (x2.dtype.itemsize + y2.dtype.itemsize)
        + num_slices * acc_rows * LANES * 4,
    )

    partials = pl.pallas_call(
        kernel,
        out_shape=jax.ShapeDtypeStruct((num_slices * acc_rows, LANES),
                                       jnp.float32),
        grid_spec=pltpu.PrefetchScalarGridSpec(
            num_scalar_prefetch=0,
            grid=(num_slices, tiles_per_slice),
            in_specs=[
                pl.BlockSpec((row_tile, LANES), in_map),
                pl.BlockSpec((row_tile, LANES), in_map),
            ],
            out_specs=pl.BlockSpec((acc_rows, LANES), lambda c, i: (c, 0)),
            scratch_shapes=[pltpu.VMEM((acc_rows, LANES), jnp.float32)],
        ),
        compiler_params=pltpu.CompilerParams(
            dimension_semantics=("parallel", "arbitrary"),
            vmem_limit_bytes=vmem_limit,
        ),
        cost_estimate=cost,
    )(x2, y2)

    return (jnp.sum(partials) / jnp.float32(n_valid)).astype(jnp.float32)


def _reference_bce(logits, labels):
    x = logits.astype(jnp.float32)
    y = labels.astype(jnp.float32)
    log_x = jnp.maximum(jnp.log(x), NEG_CLAMP)
    log_1mx = jnp.maximum(jnp.log(1.0 - x), NEG_CLAMP)
    return jnp.mean(-(y * log_x + (1.0 - y) * log_1mx))


if __name__ == "__main__":
    keys = jax.random.split(jax.random.PRNGKey(0), 8)

    # --- 1) Canonical small NCHW shape: zero-copy, single-tile fast path. ----
    shape1 = (2, 4, 16, 16)
    x1 = jax.nn.sigmoid(jax.random.normal(keys[0], shape1, dtype=jnp.float32))
    y1 = (jax.random.uniform(keys[1], shape1) > 0.5).astype(jnp.float32)
    out1 = jax.block_until_ready(binary_cross_entropy(x1, y1))
    ref1 = _reference_bce(x1, y1)
    assert jnp.allclose(out1, ref1, rtol=3e-5, atol=1e-6), (out1, ref1)

    # --- 2) Multi-tile + partial tail + over-coverage masking (forced 2-slice
    #        split and a tiny row cap so the path is exercised at small size),
    #        soft labels. ----------------------------------------------------
    shape2 = (2, 80, 128)          # 20480 elems -> 160 rows of 128 lanes
    x2 = jax.nn.sigmoid(jax.random.normal(keys[2], shape2, dtype=jnp.float32))
    y2 = jax.random.uniform(keys[3], shape2, dtype=jnp.float32)
    out2 = jax.block_until_ready(
        binary_cross_entropy(x2, y2, _row_cap=64, _force_slices=2))
    ref2 = _reference_bce(x2, y2)
    assert jnp.allclose(out2, ref2, rtol=3e-5, atol=1e-6), (out2, ref2)

    # --- 3) Awkward size (not a multiple of 128): rare pad path, default
    #        chip-derived tiling, soft labels. -------------------------------
    shape3 = (3, 7, 31, 33)        # 21483 elems
    x3 = jax.nn.sigmoid(jax.random.normal(keys[4], shape3, dtype=jnp.float32))
    y3 = jax.random.uniform(keys[5], shape3, dtype=jnp.float32)
    out3 = jax.block_until_ready(binary_cross_entropy(x3, y3))
    ref3 = _reference_bce(x3, y3)
    assert jnp.allclose(out3, ref3, rtol=3e-5, atol=1e-6), (out3, ref3)

    # --- 4) bf16 inputs (half the HBM bytes) + hard-label single-log path. ---
    x4 = x1.astype(jnp.bfloat16)
    y4 = y1.astype(jnp.bfloat16)   # labels are exactly 0/1 -> hard_labels valid
    out4 = jax.block_until_ready(binary_cross_entropy(x4, y4, hard_labels=True))
    ref4 = _reference_bce(x4, y4)
    assert jnp.allclose(out4, ref4, rtol=3e-5, atol=1e-6), (out4, ref4)

    print("KERNEL_OK")
</pallas_src>

<mosaic_0001>
module attributes {stable_mosaic.version = 11 : i64} {
  func.func @kernel(%arg0: i32, %arg1: i32, %arg2: memref<16x128xf32, #tpu.memory_space<vmem>>, %arg3: memref<16x128xf32, #tpu.memory_space<vmem>>, %arg4: memref<8x128xf32, #tpu.memory_space<vmem>>, %arg5: memref<8x128xf32, #tpu.memory_space<vmem>>) attributes {dimension_semantics = [#tpu.dimension_semantics<parallel>, #tpu.dimension_semantics<arbitrary>], iteration_bounds = array<i64: 1, 1>, scalar_prefetch = 0 : i64, scratch_operands = 1 : i64, tpu.core_type = #tpu.core_type<tc>, window_params = [{transform_indices = @transform_0, window_bounds = array<i64: 16, 128>}, {transform_indices = @transform_1, window_bounds = array<i64: 16, 128>}, {transform_indices = @transform_2, window_bounds = array<i64: 8, 128>}]} {
    %c0_i32 = arith.constant 0 : i32
    %0 = arith.cmpi eq, %arg1, %c0_i32 : i32
    %1 = arith.extui %0 : i1 to i32
    %c0_i32_0 = arith.constant 0 : i32
    %2 = arith.cmpi ne, %1, %c0_i32_0 : i32
    scf.if %2 {
      %cst_14 = arith.constant 0.000000e+00 : f32
      %26 = vector.broadcast %cst_14 : f32 to vector<8x128xf32>
      %c0_15 = arith.constant 0 : index
      %c0_16 = arith.constant 0 : index
      %27 = vector.load %arg5[%c0_15, %c0_16] : memref<8x128xf32, #tpu.memory_space<vmem>>, vector<8x128xf32>
      tpu.vector_store %arg5[%c0_15, %c0_16], %26 {strides = array<i32>} : memref<8x128xf32, #tpu.memory_space<vmem>>, vector<8x128xf32>,
    } else {
    }
    %c0 = arith.constant 0 : index
    %c0_1 = arith.constant 0 : index
    %3 = vector.load %arg2[%c0, %c0_1] : memref<16x128xf32, #tpu.memory_space<vmem>>, vector<16x128xf32>
    %c0_2 = arith.constant 0 : index
    %c0_3 = arith.constant 0 : index
    %4 = vector.load %arg3[%c0_2, %c0_3] : memref<16x128xf32, #tpu.memory_space<vmem>>, vector<16x128xf32>
    %5 = math.log %3 : vector<16x128xf32>
    %cst = arith.constant -1.000000e+02 : f32
    %6 = vector.broadcast %cst : f32 to vector<16x128xf32>
    %7 = arith.maximumf %5, %6 : vector<16x128xf32>
    %cst_4 = arith.constant 1.000000e+00 : f32
    %8 = vector.broadcast %cst_4 : f32 to vector<16x128xf32>
    %9 = arith.subf %8, %3 : vector<16x128xf32>
    %10 = math.log %9 : vector<16x128xf32>
    %cst_5 = arith.constant -1.000000e+02 : f32
    %11 = vector.broadcast %cst_5 : f32 to vector<16x128xf32>
    %12 = arith.maximumf %10, %11 : vector<16x128xf32>
    %13 = arith.subf %7, %12 : vector<16x128xf32>
    %14 = arith.mulf %4, %13 : vector<16x128xf32>
    %15 = arith.addf %12, %14 : vector<16x128xf32>
    %cst_6 = arith.constant 0.000000e+00 : f32
    %16 = vector.broadcast %cst_6 : f32 to vector<16x128xf32>
    %17 = arith.subf %16, %15 : vector<16x128xf32>
    %c0_7 = arith.constant 0 : index
    %c0_8 = arith.constant 0 : index
    %18 = vector.load %arg5[%c0_7, %c0_8] : memref<8x128xf32, #tpu.memory_space<vmem>>, vector<8x128xf32>
    %19 = vector.shape_cast %17 : vector<16x128xf32> to vector<2x8x128xf32>
    %cst_9 = arith.constant dense<0.000000e+00> : vector<8x128xf32>
    %20 = vector.multi_reduction <add>, %19, %cst_9 [0] : vector<2x8x128xf32> to vector<8x128xf32>
    %21 = arith.addf %18, %20 : vector<8x128xf32>
    %c0_10 = arith.constant 0 : index
    %c0_11 = arith.constant 0 : index
    %22 = vector.load %arg5[%c0_10, %c0_11] : memref<8x128xf32, #tpu.memory_space<vmem>>, vector<8x128xf32>
    tpu.vector_store %arg5[%c0_10, %c0_11], %21 {strides = array<i32>} : memref<8x128xf32, #tpu.memory_space<vmem>>, vector<8x128xf32>,
    %c0_i32_12 = arith.constant 0 : i32
    %23 = arith.cmpi eq, %arg1, %c0_i32_12 : i32
    %24 = arith.extui %23 : i1 to i32
    %c0_i32_13 = arith.constant 0 : i32
    %25 = arith.cmpi ne, %24, %c0_i32_13 : i32
    scf.if %25 {
      %c0_14 = arith.constant 0 : index
      %c0_15 = arith.constant 0 : index
      %26 = vector.load %arg5[%c0_14, %c0_15] : memref<8x128xf32, #tpu.memory_space<vmem>>, vector<8x128xf32>
      %c0_16 = arith.constant 0 : index
      %c0_17 = arith.constant 0 : index
      %27 = vector.load %arg4[%c0_16, %c0_17] : memref<8x128xf32, #tpu.memory_space<vmem>>, vector<8x128xf32>
      tpu.vector_store %arg4[%c0_16, %c0_17], %26 {strides = array<i32>} : memref<8x128xf32, #tpu.memory_space<vmem>>, vector<8x128xf32>,
    } else {
    }
    return
  }
  func.func @transform_0(%arg0: i32, %arg1: i32) -> (i32, i32) {
    %c1_i32 = arith.constant 1 : i32
    %0 = arith.muli %arg0, %c1_i32 : i32
    %1 = arith.addi %0, %arg1 : i32
    %c0_i32 = arith.constant 0 : i32
    %2 = arith.minsi %1, %c0_i32 : i32
    %c0_i32_0 = arith.constant 0 : i32
    %c0_i32_1 = arith.constant 0 : i32
    return %2, %c0_i32_0 : i32, i32
  }
  func.func @transform_1(%arg0: i32, %arg1: i32) -> (i32, i32) {
    %c1_i32 = arith.constant 1 : i32
    %0 = arith.muli %arg0, %c1_i32 : i32
    %1 = arith.addi %0, %arg1 : i32
    %c0_i32 = arith.constant 0 : i32
    %2 = arith.minsi %1, %c0_i32 : i32
    %c0_i32_0 = arith.constant 0 : i32
    %c0_i32_1 = arith.constant 0 : i32
    return %2, %c0_i32_0 : i32, i32
  }
  func.func @transform_2(%arg0: i32, %arg1: i32) -> (i32, i32) {
    %c0_i32 = arith.constant 0 : i32
    %c0_i32_0 = arith.constant 0 : i32
    return %arg0, %c0_i32 : i32, i32
  }
}

</mosaic_0001>

<llo_original>
// kernel: tpu_custom_call.1
$region0: #{tpu_custom_call.1}
  #allocation0 [shape = 'u32[]', space=smem, size = 0x4, offset = 0x4, fixed_abs, tag = 'smem constant byte address 0x4 - core index']
  #allocation1 [shape = 'u32[72,128]{1,0:T(1,128)}', space=vmem, size = 0x9000, scoped, tag = 'internal scratch']
  #allocation2 [shape = 'f32[8,128]{1,0:T(8,128)}', space=vmem, size = 0x1000, scoped, tag = 'scratch operand']
  %s0 = inlined_call_operand.hbm [shape: f32[16,128], index: 0, kind: input, shape index: {}]
  %s1 = inlined_call_operand.hbm [shape: f32[16,128], index: 1, kind: input, shape index: {}]
  %s2 = inlined_call_operand.hbm [shape: f32[8,128], index: 2, kind: output, shape index: {}]
  %s3 = sld [smem:[#allocation0]]
  $region34: #{tpu_custom_call.1} parent=0
    _
  %s5 = ssub.s32 1, %s3
  %s6 = scalar_select 0, %s5, %s3
  $region1: #{tpu_custom_call.1} parent=0
    #allocation3 [shape = 'u8[8192]{0}', space=vmem, size = 0x2000, scoped, tag = 'input window, operand 0, single buffered']
    #allocation4 [shape = 's32[1]{0}', space=sflag, size = 0x4, scoped, tag = 'scoped memory for tpu_custom_call.1']
    #allocation5 [shape = 's32[1]{0}', space=sflag, size = 0x4, scoped, tag = 'scoped memory for tpu_custom_call.1']
    #allocation6 [shape = 'u8[8192]{0}', space=vmem, size = 0x2000, scoped, tag = 'input window, operand 1, single buffered']
    #allocation7 [shape = 's32[1]{0}', space=sflag, size = 0x4, scoped, tag = 'scoped memory for tpu_custom_call.1']
    #allocation8 [shape = 'u8[4096]{0}', space=vmem, size = 0x1000, scoped, tag = 'output window, operand 0, single buffered']
    %7 = vsyncpa [#allocation4], 0
    %8 = vsyncpa [#allocation7], 0
    %9 = vsyncpa [#allocation5], 0
    // Predicated region
    $region2: #{tpu_custom_call.1} parent=1 // pred_check
      _
    $region3: #{tpu_custom_call.1} parent=1 // pred_check_branch
      %11 = sbr.rel (0) target = $region5
    $region4: #{tpu_custom_call.1} parent=1 // pred_region
      %s12 = sadd.s32 0, 0
      %p13 = scmp.lt.s32.totalorder %s12, 0
      %s14 = scalar_select %p13, %s12, 0
      %s15 = smul.u32 2, %s14
      %17 = vsyncadd [#allocation4], 0
      %s18 = smul.addr %s15, 8
      %s19 = scalar_lea.hbm %s0, %s18
      %s20 = sshll.u32 %s19, 4
      %s21 = int_to_ptr.hbm [resolvable:$true] %s20
      %s22 = sshll.u32 [#allocation3], 4
      %s23 = int_to_ptr.vmem [resolvable:$true] %s22
      %28 = dma.hbm_to_vmem [thread:$0]  %s21, 256, %s23, [#allocation4], 128, 128, 8
    $region5: #{tpu_custom_call.1} parent=1 // pred_fallthru
      _
    // Predicated region
    $region6: #{tpu_custom_call.1} parent=1 // pred_check
      _
    $region7: #{tpu_custom_call.1} parent=1 // pred_check_branch
      %30 = sbr.rel (0) target = $region9
    $region8: #{tpu_custom_call.1} parent=1 // pred_region
      %s31 = sadd.s32 0, 0
      %p32 = scmp.lt.s32.totalorder %s31, 0
      %s33 = scalar_select %p32, %s31, 0
      %s34 = smul.u32 2, %s33
      %36 = vsyncadd [#allocation7], 0
      %s37 = smul.addr %s34, 8
      %s38 = scalar_lea.hbm %s1, %s37
      %s39 = sshll.u32 %s38, 4
      %s40 = int_to_ptr.hbm [resolvable:$true] %s39
      %s41 = sshll.u32 [#allocation6], 4
      %s42 = int_to_ptr.vmem [resolvable:$true] %s41
      %47 = dma.hbm_to_vmem [thread:$0]  %s40, 256, %s42, [#allocation7], 128, 128, 8
    $region9: #{tpu_custom_call.1} parent=1 // pred_fallthru
      _
    // Predicated region
    $region10: #{tpu_custom_call.1} parent=1 // pred_check
      _
    $region11: #{tpu_custom_call.1} parent=1 // pred_check_branch
      %49 = sbr.rel (0) target = $region13
    $region12: #{tpu_custom_call.1} parent=1 // pred_region
      %51 = dma.done [#allocation4], 256
    $region13: #{tpu_custom_call.1} parent=1 // pred_fallthru
      _
    // Predicated region
    $region14: #{tpu_custom_call.1} parent=1 // pred_check
      _
    $region15: #{tpu_custom_call.1} parent=1 // pred_check_branch
      %53 = sbr.rel (0) target = $region17
    $region16: #{tpu_custom_call.1} parent=1 // pred_region
      %55 = dma.done [#allocation7], 256
    $region17: #{tpu_custom_call.1} parent=1 // pred_fallthru
      _
    %s56 = sadd.s32 0, 0
    %p57 = scmp.lt.s32.totalorder %s56, 0
    %s58 = scalar_select %p57, %s56, 0
    %s59 = smul.u32 2, %s58
    %s60 = sadd.s32 0, 0
    %p61 = scmp.lt.s32.totalorder %s60, 0
    %s62 = scalar_select %p61, %s60, 0
    %s63 = smul.u32 2, %s62
    %p64 = scmp.eq.s32.totalorder 0, 0
    // Predicated region
    $region18: #{tpu_custom_call.1} parent=1 // pred_check
      %p65 = pneg %p64
    $region19: #{tpu_custom_call.1} parent=1 // pred_check_branch
      %67 = sbr.rel (%p65) target = $region21
    $region20: #{tpu_custom_call.1} parent=1 // pred_region
      %68 = vst [vmem:[#allocation2] sm:$0xff] 0.0
    $region21: #{tpu_custom_call.1} parent=1 // pred_fallthru
      _
    %v69 = vld [vmem:[#allocation3] sm:$0xff]
    %v70 = vld [vmem:[#allocation3 + $0x8] sm:$0xff]
    %v71 = vld [vmem:[#allocation6] sm:$0xff]
    %v72 = vld [vmem:[#allocation6 + $0x8] sm:$0xff]
    %v73 = vlog2.pop %v69
    %v74 = vmul.f32 %v73, 0.6931472
    %v75 = vlog2.pop %v70
    %v76 = vmul.f32 %v75, 0.6931472
    %v77 = vmax.f32 %v74, -100.0
    %v78 = vmax.f32 %v76, -100.0
    %v79 = vsub.f32 1.0, %v69
    %v80 = vsub.f32 1.0, %v70
    %v81 = vlog2.pop %v79
    %v82 = vmul.f32 %v81, 0.6931472
    %v83 = vlog2.pop %v80
    %v84 = vmul.f32 %v83, 0.6931472
    %v85 = vmax.f32 %v82, -100.0
    %v86 = vmax.f32 %v84, -100.0
    %v87 = vsub.f32 %v77, %v85
    %v88 = vsub.f32 %v78, %v86
    %v89 = vmul.f32 %v71, %v87
    %v90 = vmul.f32 %v72, %v88
    %v91 = vadd.f32 %v85, %v89
    %v92 = vadd.f32 %v86, %v90
    %v93 = vsub.f32 0.0, %v91
    %v94 = vsub.f32 0.0, %v92
    %v95 = vld [vmem:[#allocation2] sm:$0xff]
    %v96 = vadd.f32 %v93, %v94
    %v97 = vadd.f32 %v95, %v96
    %98 = vst [vmem:[#allocation2] sm:$0xff] %v97
    // Predicated region
    $region22: #{tpu_custom_call.1} parent=1 // pred_check
      %p99 = pneg %p64
    $region23: #{tpu_custom_call.1} parent=1 // pred_check_branch
      %101 = sbr.rel (%p99) target = $region25
    $region24: #{tpu_custom_call.1} parent=1 // pred_region
      %v102 = vld [vmem:[#allocation2] sm:$0xff]
      %103 = vst [vmem:[#allocation8] sm:$0xff] %v102
    $region25: #{tpu_custom_call.1} parent=1 // pred_fallthru
      _
    // Predicated region
    $region26: #{tpu_custom_call.1} parent=1 // pred_check
      _
    $region27: #{tpu_custom_call.1} parent=1 // pred_check_branch
      %105 = sbr.rel (0) target = $region29
    $region28: #{tpu_custom_call.1} parent=1 // pred_region
      %107 = vsyncadd [#allocation5], 0
      %s109 = sshll.u32 [#allocation8], 4
      %s110 = int_to_ptr.vmem [resolvable:$true] %s109
      %s111 = sshll.u32 %s2, 4
      %s112 = int_to_ptr.hbm [resolvable:$true] %s111
      %114 = dma.vmem_to_hbm [thread:$0]  %s110, 128, %s112, [#allocation5]
    $region29: #{tpu_custom_call.1} parent=1 // pred_fallthru
      _
    // Predicated region
    $region30: #{tpu_custom_call.1} parent=1 // pred_check
      _
    $region31: #{tpu_custom_call.1} parent=1 // pred_check_branch
      %116 = sbr.rel (0) target = $region33
    $region32: #{tpu_custom_call.1} parent=1 // pred_region
      %118 = dma.done [#allocation5], 128
    $region33: #{tpu_custom_call.1} parent=1 // pred_fallthru
      _
    %119 = vsyncpa [#allocation4], 1
    %120 = vsyncpa [#allocation7], 1
    %121 = vsyncpa [#allocation5], 1

</llo_original>
